<compile_context>
chip_gen: v7x
topology: tpu7x:2x2x1
jax: 0.10.0
libtpu: 0.0.40
codegen_flags: <defaults>
</compile_context>

<pallas_src>
import functools

import jax
import jax.numpy as jnp
from jax.experimental import pallas as pl
from jax.experimental.pallas import tpu as pltpu


def _conv_fold_kernel(x_ref, w_ref, o_ref, a_ref, *, taps, sh, sw, Wi, L_out, Cp):
    """Single-matmul path: fold all KH*KW taps into the contraction dim.

    x_ref: (P, Cp, L_in)   phase-split, spatially-flattened padded image
    w_ref: (toc, T*Cp)     folded weight slab (VMEM resident)
    o_ref: (toc, L_out)    lane-dense wide output (L_out = OH * Wi)
    a_ref: (T*Cp, L_out)   VMEM staging buffer (mini-im2col, VMEM-only copies)
    """
    for t, (kh, kw) in enumerate(taps):
        p = (kh % sh) * sw + (kw % sw)          # stride phase plane
        off = (kh // sh) * Wi + (kw // sw)      # flat shift inside that plane
        # Sublane-aligned copy (Cp is a multiple of the native sublane tile).
        a_ref[t * Cp:(t + 1) * Cp, :] = x_ref[p, :, off:off + L_out]
    # One MXU pass over all taps and channels; f32 accumulation; single store.
    o_ref[...] = jnp.dot(
        w_ref[...], a_ref[...], preferred_element_type=jnp.float32
    ).astype(o_ref.dtype)


def _conv_taps_kernel(x_ref, w_ref, o_ref, *, taps, sh, sw, Wi, L_out):
    """Fallback path: per-tap GEMMs accumulated in a traced value (no scratch
    read-modify-write), single store at the end.

    x_ref: (P, Cp, L_in), w_ref: (T, toc, Cp), o_ref: (toc, L_out)
    """
    acc = None
    for t, (kh, kw) in enumerate(taps):
        p = (kh % sh) * sw + (kw % sw)
        off = (kh // sh) * Wi + (kw // sw)
        contrib = jnp.dot(
            w_ref[t], x_ref[p, :, off:off + L_out],
            preferred_element_type=jnp.float32,
        )
        acc = contrib if acc is None else acc + contrib
    o_ref[...] = acc.astype(o_ref.dtype)


def _pick_oc_tile(OC):
    # Second ("parallel") grid axis over OC: keeps both v7x TensorCores busy
    # even at N == 1 and shrinks the per-step output block.  Only split when
    # it divides OC exactly and leaves a healthy MXU M-dim.
    for t in (256, 128, 64, 32):
        if OC % t == 0 and OC // t >= 2:
            return t
    return OC


def basic_conv2d(x_nchw, weight_oihw, stride, padding, *, compute_dtype=None,
                 fold=None):
    """Equivalent of BasicConv2d.forward (Conv2d, bias=False).

    x_nchw:      (N, C, H, W)
    weight_oihw: (OC, C, KH, KW)
    stride / padding: int or (int, int)
    compute_dtype: None (= input dtype) or jnp.bfloat16.  bf16 feeds the MXU
        at full rate on v5e/v6e/v7x and halves input DMA bytes; accumulation
        stays f32 either way.
    fold: None (auto) / True / False — fold all taps into one contraction
        via an in-VMEM staging buffer, or fall back to per-tap dots.
    returns:     (N, OC, OH, OW) in the input dtype.
    """
    if isinstance(stride, int):
        stride = (stride, stride)
    if isinstance(padding, int):
        padding = (padding, padding)
    sh, sw = stride
    ph, pw = padding

    N, C, H, W = x_nchw.shape
    OC, Cw, KH, KW = weight_oihw.shape
    assert Cw == C, (Cw, C)
    OH = (H + 2 * ph - KH) // sh + 1
    OW = (W + 2 * pw - KW) // sw + 1
    out_dtype = jnp.dtype(x_nchw.dtype)
    cdt = jnp.dtype(compute_dtype) if compute_dtype is not None else out_dtype

    # Channel pad so staging-buffer rows land on native sublane-tile offsets
    # (8 rows for 4-byte dtypes, 16 for 2-byte).  Free for realistic C.
    sub = 8 * max(1, 4 // cdt.itemsize)
    Cp = -(-C // sub) * sub

    # Padded extents: whole rows/cols per stride phase, plus enough extra zero
    # rows at the bottom so every tap's flat (shifted) window stays in bounds.
    Wi = -(-(W + 2 * pw) // sw)                                # cols per phase
    Wpp = Wi * sw
    Hi = max(-(-(H + 2 * ph) // sh), OH + (KH - 1) // sh + 1)  # rows per phase
    Hpp = Hi * sh

    # TODO(synk): the zero-pad + phase-split below is an extra XLA pass over
    # the input; a manual-DMA (memory_space=pl.ANY) variant could absorb it.
    x_pad = jnp.pad(
        x_nchw,
        ((0, 0), (0, Cp - C), (ph, Hpp - H - ph), (pw, Wpp - W - pw)),
    ).astype(cdt)

    # Phase split (identity / free for stride 1):
    #   x_ph[n, p*sw + q, c, i*Wi + j] == x_pad[n, c, i*sh + p, j*sw + q]
    P = sh * sw
    x_ph = (
        x_pad.reshape(N, Cp, Hi, sh, Wi, sw)
        .transpose(0, 3, 5, 1, 2, 4)
        .reshape(N, P, Cp, Hi * Wi)
    )
    L_in = Hi * Wi
    L_out = OH * Wi
    T = KH * KW
    taps = tuple((kh, kw) for kh in range(KH) for kw in range(KW))

    w_pad = jnp.pad(weight_oihw, ((0, 0), (0, Cp - C), (0, 0), (0, 0))).astype(cdt)

    toc = _pick_oc_tile(OC)
    n_oc = OC // toc

    if fold is None:
        # Use the folded single-matmul path unless the staging buffer is huge.
        fold = (T * Cp * L_out * cdt.itemsize) <= (12 << 20)

    if fold:
        # Folded weight: column index (kh*KW + kw)*Cp + c  (matches a_ref rows).
        w_arg = jnp.transpose(w_pad, (0, 2, 3, 1)).reshape(OC, T * Cp)
        w_spec = pl.BlockSpec((toc, T * Cp), lambda n, j: (j, 0))
        scratch = [pltpu.VMEM((T * Cp, L_out), cdt)]
        kernel = functools.partial(
            _conv_fold_kernel, taps=taps, sh=sh, sw=sw, Wi=Wi, L_out=L_out, Cp=Cp
        )
    else:
        # Per-tap weight slabs: (T, OC, Cp), VMEM resident.
        w_arg = jnp.transpose(w_pad, (2, 3, 0, 1)).reshape(T, OC, Cp)
        w_spec = pl.BlockSpec((T, toc, Cp), lambda n, j: (0, j, 0))
        scratch = []
        kernel = functools.partial(
            _conv_taps_kernel, taps=taps, sh=sh, sw=sw, Wi=Wi, L_out=L_out
        )

    # Explicit VMEM budget (double-buffered input/weights/output + staging).
    est = (
        2 * P * Cp * L_in * cdt.itemsize
        + 2 * toc * L_out * out_dtype.itemsize
        + 2 * toc * T * Cp * cdt.itemsize
        + (T * Cp * L_out * cdt.itemsize if fold else 0)
    )
    vmem_limit = int(min(max(2 * est, 32 * 1024 * 1024), 128 * 1024 * 1024))

    out_wide = pl.pallas_call(
        kernel,
        out_shape=jax.ShapeDtypeStruct((N, OC, L_out), out_dtype),
        grid=(N, n_oc),
        in_specs=[
            pl.BlockSpec((None, P, Cp, L_in), lambda n, j: (n, 0, 0, 0)),
            w_spec,
        ],
        out_specs=pl.BlockSpec((None, toc, L_out), lambda n, j: (n, j, 0)),
        scratch_shapes=scratch,
        compiler_params=pltpu.CompilerParams(
            dimension_semantics=("parallel", "parallel"),
            vmem_limit_bytes=vmem_limit,
        ),
    )(x_ph, w_arg)

    # Drop the (Wi - OW) wrap-around junk columns of each output row.
    # Layout is already NCHW -> no post-hoc transpose.
    return out_wide.reshape(N, OC, OH, Wi)[:, :, :, :OW]


def _reference_conv(x_nchw, weight_oihw, stride, padding):
    if isinstance(stride, int):
        stride = (stride, stride)
    if isinstance(padding, int):
        padding = (padding, padding)
    return jax.lax.conv_general_dilated(
        x_nchw, weight_oihw,
        window_strides=stride,
        padding=[(padding[0], padding[0]), (padding[1], padding[1])],
        dimension_numbers=("NCHW", "OIHW", "NCHW"),
    )


if __name__ == "__main__":
    key = jax.random.PRNGKey(0)
    kx, kw = jax.random.split(key)

    # Small shapes consistent with BasicConv2d(in=4, out=8, k=3, ...)
    N, C, H, W = 2, 4, 16, 16
    OC, KH, KW = 8, 3, 3

    x = jax.random.normal(kx, (N, C, H, W), dtype=jnp.float32)
    fan_in = C * KH * KW
    weight = jax.random.normal(kw, (OC, C, KH, KW), dtype=jnp.float32) * (
        (2.0 / fan_in) ** 0.5
    )

    conv = jax.jit(
        basic_conv2d,
        static_argnames=("stride", "padding", "compute_dtype", "fold"),
    )

    # f32 folded path (validation-grade precision), several stride/padding combos.
    for stride, padding in [((1, 1), (1, 1)), ((2, 2), (1, 1)), (1, 0)]:
        out = jax.block_until_ready(conv(x, weight, stride=stride, padding=padding))
        ref = _reference_conv(x, weight, stride, padding)
        assert out.shape == ref.shape, (out.shape, ref.shape)
        if not jnp.allclose(out, ref, atol=5e-4, rtol=5e-4):
            raise AssertionError(
                f"mismatch stride={stride} padding={padding}: "
                f"max err {jnp.max(jnp.abs(out - ref))}"
            )

    # Fallback (per-tap value-accumulation) path smoke check.
    out_nf = jax.block_until_ready(
        conv(x, weight, stride=(1, 1), padding=(1, 1), fold=False)
    )
    ref = _reference_conv(x, weight, (1, 1), (1, 1))
    if not jnp.allclose(out_nf, ref, atol=5e-4, rtol=5e-4):
        raise AssertionError(
            f"unfolded path mismatch: max err {jnp.max(jnp.abs(out_nf - ref))}"
        )

    # Reduced-precision path (bf16 MXU inputs, f32 accumulation) — valid on
    # v5e / v6e / v7x.  Loose tolerance vs. the f32 XLA reference.
    out_bf16 = jax.block_until_ready(
        conv(x, weight, stride=(1, 1), padding=(1, 1), compute_dtype=jnp.bfloat16)
    )
    if not jnp.allclose(out_bf16, ref, atol=1e-1, rtol=1e-1):
        raise AssertionError(
            f"bf16 path mismatch: max err {jnp.max(jnp.abs(out_bf16 - ref))}"
        )

    print("KERNEL_OK")
</pallas_src>

<mosaic_0001>
module attributes {stable_mosaic.version = 11 : i64} {
  func.func @_conv_fold_kernel(%arg0: i32, %arg1: i32, %arg2: memref<1x1x8x342xf32, #tpu.memory_space<vmem>>, %arg3: memref<8x72xf32, #tpu.memory_space<vmem>>, %arg4: memref<1x8x288xf32, #tpu.memory_space<vmem>>, %arg5: memref<72x288xf32, #tpu.memory_space<vmem>>) attributes {dimension_semantics = [#tpu.dimension_semantics<parallel>, #tpu.dimension_semantics<parallel>], iteration_bounds = array<i64: 2, 1>, scalar_prefetch = 0 : i64, scratch_operands = 1 : i64, tpu.core_type = #tpu.core_type<tc>, window_params = [{transform_indices = @transform_0, window_bounds = array<i64: 1, 1, 8, 342>}, {transform_indices = @transform_1, window_bounds = array<i64: 8, 72>}, {transform_indices = @transform_2, window_bounds = array<i64: 1, 8, 288>}]} {
    %c0 = arith.constant 0 : index
    %c0_0 = arith.constant 0 : index
    %c0_1 = arith.constant 0 : index
    %c0_2 = arith.constant 0 : index
    %0 = vector.load %arg2[%c0, %c0_0, %c0_1, %c0_2] : memref<1x1x8x342xf32, #tpu.memory_space<vmem>>, vector<1x1x8x288xf32>
    %1 = vector.shape_cast %0 : vector<1x1x8x288xf32> to vector<8x288xf32>
    %c0_3 = arith.constant 0 : index
    %c0_4 = arith.constant 0 : index
    %2 = vector.load %arg5[%c0_3, %c0_4] : memref<72x288xf32, #tpu.memory_space<vmem>>, vector<8x288xf32>
    tpu.vector_store %arg5[%c0_3, %c0_4], %1 {strides = array<i32>} : memref<72x288xf32, #tpu.memory_space<vmem>>, vector<8x288xf32>,
    %c0_5 = arith.constant 0 : index
    %c0_6 = arith.constant 0 : index
    %c0_7 = arith.constant 0 : index
    %c1 = arith.constant 1 : index
    %3 = vector.load %arg2[%c0_5, %c0_6, %c0_7, %c1] : memref<1x1x8x342xf32, #tpu.memory_space<vmem>>, vector<1x1x8x288xf32>
    %4 = vector.shape_cast %3 : vector<1x1x8x288xf32> to vector<8x288xf32>
    %c8 = arith.constant 8 : index
    %c0_8 = arith.constant 0 : index
    %5 = vector.load %arg5[%c8, %c0_8] : memref<72x288xf32, #tpu.memory_space<vmem>>, vector<8x288xf32>
    tpu.vector_store %arg5[%c8, %c0_8], %4 {strides = array<i32>} : memref<72x288xf32, #tpu.memory_space<vmem>>, vector<8x288xf32>,
    %c0_9 = arith.constant 0 : index
    %c0_10 = arith.constant 0 : index
    %c0_11 = arith.constant 0 : index
    %c2 = arith.constant 2 : index
    %6 = vector.load %arg2[%c0_9, %c0_10, %c0_11, %c2] : memref<1x1x8x342xf32, #tpu.memory_space<vmem>>, vector<1x1x8x288xf32>
    %7 = vector.shape_cast %6 : vector<1x1x8x288xf32> to vector<8x288xf32>
    %c16 = arith.constant 16 : index
    %c0_12 = arith.constant 0 : index
    %8 = vector.load %arg5[%c16, %c0_12] : memref<72x288xf32, #tpu.memory_space<vmem>>, vector<8x288xf32>
    tpu.vector_store %arg5[%c16, %c0_12], %7 {strides = array<i32>} : memref<72x288xf32, #tpu.memory_space<vmem>>, vector<8x288xf32>,
    %c0_13 = arith.constant 0 : index
    %c0_14 = arith.constant 0 : index
    %c0_15 = arith.constant 0 : index
    %c18 = arith.constant 18 : index
    %9 = vector.load %arg2[%c0_13, %c0_14, %c0_15, %c18] : memref<1x1x8x342xf32, #tpu.memory_space<vmem>>, vector<1x1x8x288xf32>
    %10 = vector.shape_cast %9 : vector<1x1x8x288xf32> to vector<8x288xf32>
    %c24 = arith.constant 24 : index
    %c0_16 = arith.constant 0 : index
    %11 = vector.load %arg5[%c24, %c0_16] : memref<72x288xf32, #tpu.memory_space<vmem>>, vector<8x288xf32>
    tpu.vector_store %arg5[%c24, %c0_16], %10 {strides = array<i32>} : memref<72x288xf32, #tpu.memory_space<vmem>>, vector<8x288xf32>,
    %c0_17 = arith.constant 0 : index
    %c0_18 = arith.constant 0 : index
    %c0_19 = arith.constant 0 : index
    %c19 = arith.constant 19 : index
    %12 = vector.load %arg2[%c0_17, %c0_18, %c0_19, %c19] : memref<1x1x8x342xf32, #tpu.memory_space<vmem>>, vector<1x1x8x288xf32>
    %13 = vector.shape_cast %12 : vector<1x1x8x288xf32> to vector<8x288xf32>
    %c32 = arith.constant 32 : index
    %c0_20 = arith.constant 0 : index
    %14 = vector.load %arg5[%c32, %c0_20] : memref<72x288xf32, #tpu.memory_space<vmem>>, vector<8x288xf32>
    tpu.vector_store %arg5[%c32, %c0_20], %13 {strides = array<i32>} : memref<72x288xf32, #tpu.memory_space<vmem>>, vector<8x288xf32>,
    %c0_21 = arith.constant 0 : index
    %c0_22 = arith.constant 0 : index
    %c0_23 = arith.constant 0 : index
    %c20 = arith.constant 20 : index
    %15 = vector.load %arg2[%c0_21, %c0_22, %c0_23, %c20] : memref<1x1x8x342xf32, #tpu.memory_space<vmem>>, vector<1x1x8x288xf32>
    %16 = vector.shape_cast %15 : vector<1x1x8x288xf32> to vector<8x288xf32>
    %c40 = arith.constant 40 : index
    %c0_24 = arith.constant 0 : index
    %17 = vector.load %arg5[%c40, %c0_24] : memref<72x288xf32, #tpu.memory_space<vmem>>, vector<8x288xf32>
    tpu.vector_store %arg5[%c40, %c0_24], %16 {strides = array<i32>} : memref<72x288xf32, #tpu.memory_space<vmem>>, vector<8x288xf32>,
    %c0_25 = arith.constant 0 : index
    %c0_26 = arith.constant 0 : index
    %c0_27 = arith.constant 0 : index
    %c36 = arith.constant 36 : index
    %18 = vector.load %arg2[%c0_25, %c0_26, %c0_27, %c36] : memref<1x1x8x342xf32, #tpu.memory_space<vmem>>, vector<1x1x8x288xf32>
    %19 = vector.shape_cast %18 : vector<1x1x8x288xf32> to vector<8x288xf32>
    %c48 = arith.constant 48 : index
    %c0_28 = arith.constant 0 : index
    %20 = vector.load %arg5[%c48, %c0_28] : memref<72x288xf32, #tpu.memory_space<vmem>>, vector<8x288xf32>
    tpu.vector_store %arg5[%c48, %c0_28], %19 {strides = array<i32>} : memref<72x288xf32, #tpu.memory_space<vmem>>, vector<8x288xf32>,
    %c0_29 = arith.constant 0 : index
    %c0_30 = arith.constant 0 : index
    %c0_31 = arith.constant 0 : index
    %c37 = arith.constant 37 : index
    %21 = vector.load %arg2[%c0_29, %c0_30, %c0_31, %c37] : memref<1x1x8x342xf32, #tpu.memory_space<vmem>>, vector<1x1x8x288xf32>
    %22 = vector.shape_cast %21 : vector<1x1x8x288xf32> to vector<8x288xf32>
    %c56 = arith.constant 56 : index
    %c0_32 = arith.constant 0 : index
    %23 = vector.load %arg5[%c56, %c0_32] : memref<72x288xf32, #tpu.memory_space<vmem>>, vector<8x288xf32>
    tpu.vector_store %arg5[%c56, %c0_32], %22 {strides = array<i32>} : memref<72x288xf32, #tpu.memory_space<vmem>>, vector<8x288xf32>,
    %c0_33 = arith.constant 0 : index
    %c0_34 = arith.constant 0 : index
    %c0_35 = arith.constant 0 : index
    %c38 = arith.constant 38 : index
    %24 = vector.load %arg2[%c0_33, %c0_34, %c0_35, %c38] : memref<1x1x8x342xf32, #tpu.memory_space<vmem>>, vector<1x1x8x288xf32>
    %25 = vector.shape_cast %24 : vector<1x1x8x288xf32> to vector<8x288xf32>
    %c64 = arith.constant 64 : index
    %c0_36 = arith.constant 0 : index
    %26 = vector.load %arg5[%c64, %c0_36] : memref<72x288xf32, #tpu.memory_space<vmem>>, vector<8x288xf32>
    tpu.vector_store %arg5[%c64, %c0_36], %25 {strides = array<i32>} : memref<72x288xf32, #tpu.memory_space<vmem>>, vector<8x288xf32>,
    %c0_37 = arith.constant 0 : index
    %c0_38 = arith.constant 0 : index
    %27 = vector.load %arg3[%c0_37, %c0_38] : memref<8x72xf32, #tpu.memory_space<vmem>>, vector<8x72xf32>
    %c0_39 = arith.constant 0 : index
    %c0_40 = arith.constant 0 : index
    %28 = vector.load %arg5[%c0_39, %c0_40] : memref<72x288xf32, #tpu.memory_space<vmem>>, vector<72x288xf32>
    %cst = arith.constant dense<0.000000e+00> : vector<8x288xf32>
    %29 = tpu.matmul %27, %28, %cst {dimension_numbers = #tpu.dot_dimension_numbers<[1], [0], [0], [1], [0, 0, 1, 1], [], []>} : vector<8x72xf32>, vector<72x288xf32>, vector<8x288xf32> -> vector<8x288xf32>
    %c0_41 = arith.constant 0 : index
    %c0_42 = arith.constant 0 : index
    %c0_43 = arith.constant 0 : index
    %30 = vector.load %arg4[%c0_41, %c0_42, %c0_43] : memref<1x8x288xf32, #tpu.memory_space<vmem>>, vector<1x8x288xf32>
    %31 = vector.shape_cast %30 : vector<1x8x288xf32> to vector<8x288xf32>
    %32 = vector.shape_cast %29 : vector<8x288xf32> to vector<1x8x288xf32>
    tpu.vector_store %arg4[%c0_41, %c0_42, %c0_43], %32 {strides = array<i32>} : memref<1x8x288xf32, #tpu.memory_space<vmem>>, vector<1x8x288xf32>,
    return
  }
  func.func @transform_0(%arg0: i32, %arg1: i32) -> (i32, i32, i32, i32) {
    %c0_i32 = arith.constant 0 : i32
    %c0_i32_0 = arith.constant 0 : i32
    %c0_i32_1 = arith.constant 0 : i32
    %c0_i32_2 = arith.constant 0 : i32
    return %arg0, %c0_i32, %c0_i32_0, %c0_i32_1 : i32, i32, i32, i32
  }
  func.func @transform_1(%arg0: i32, %arg1: i32) -> (i32, i32) {
    %c0_i32 = arith.constant 0 : i32
    %c0_i32_0 = arith.constant 0 : i32
    return %arg1, %c0_i32 : i32, i32
  }
  func.func @transform_2(%arg0: i32, %arg1: i32) -> (i32, i32, i32) {
    %c0_i32 = arith.constant 0 : i32
    %c0_i32_0 = arith.constant 0 : i32
    return %arg0, %arg1, %c0_i32 : i32, i32, i32
  }
}

</mosaic_0001>

<llo_original>
// kernel: basic_conv2d.1
$region0: #{basic_conv2d.1}
  #allocation0 [shape = 'u32[]', space=smem, size = 0x4, offset = 0x4, fixed_abs, tag = 'smem constant byte address 0x4 - core index']
  #allocation1 [shape = 'u32[144,128]{1,0:T(1,128)}', space=vmem, size = 0x12000, scoped, tag = 'internal scratch']
  #allocation2 [shape = 'f32[72,288]{1,0:T(8,128)}', space=vmem, size = 0x1b000, scoped, tag = 'scratch operand']
  %s0 = inlined_call_operand.vmem [shape: f32[2,1,8,342], index: 0, kind: input, shape index: {}]
  %s1 = inlined_call_operand.vmem [shape: f32[8,72], index: 1, kind: input, shape index: {}]
  %s2 = inlined_call_operand.vmem [shape: f32[2,8,288], index: 2, kind: output, shape index: {}]
  %s3 = sld [smem:[#allocation0]]
  $region41: #{basic_conv2d.1} parent=0
    _
  %s5 = ssub.s32 1, %s3
  %s6 = scalar_select 0, %s5, %s3
  loop: start=0, step=1, limit=4
  $region2: #{basic_conv2d.1} parent=0 // loop_pre_header
    _
  $region3: #{basic_conv2d.1} parent=0 // loop_header
    %s8 = sphi 0, %s12
    %p9 = scmp.ge.s32.totalorder %s8, 4
    %s15 = sphi 0, %s27
    %s16 = sphi 0, %s23
    %s17 = sphi 0, %s15
    %s18 = sphi 0, %s16
    %s19 = sphi 0, %s17
    %s20 = sphi 0, %s18
    %s30 = sphi 0, %s32
    %s33 = sphi 0, %s30
    %s34 = sphi 0, %s33
    %s50 = sphi 0, %s34
    %s56 = sphi 0, %s58
    %s59 = sphi 0, %s56
    %s60 = sphi 0, %s59
    %s76 = sphi 0, %s60
    %s84 = sphi 0, %s86
    %s87 = sphi 0, %s84
    %s88 = sphi 0, %s87
    %s104 = sphi 0, %s88
  $region4: #{basic_conv2d.1} parent=0 // loop_header_branch
    %11 = sbr.rel (%p9) target = $region8
  $region5: #{basic_conv2d.1} parent=0 // loop_body
    %s13 = ssub.s32 %s8, 1
    %s14 = ssub.s32 %s8, 2
    %s21 = sadd.s32 1, %s16
    %p22 = scmp.ge.s32.totalorder %s21, 1
    %s23 = scalar_select %p22, 0, %s21
    %s24 = sadd.s32 1, %s15
    %s25 = scalar_select %p22, %s24, %s15
    %p26 = scmp.ge.s32.totalorder %s25, 2
    %s27 = scalar_select %p26, 0, %s25
    %s28 = ssub.s32 %s15, %s27
    %p29 = scmp.eq.s32.totalorder %s28, 0
    %s31 = sadd.s32 %s30, 1
    %s32 = scalar_select %p29, %s30, %s31
    %p35 = pneg %p29
    %p36 = scmp.eq.s32.totalorder %s8, 1
    %p37 = por %p35, %p36
    %p38 = scmp.ne.s32.totalorder %s30, %s33
    %p39 = scmp.eq.s32.totalorder %s8, 0
    %p40 = por %p38, %p39
    %p41 = scmp.ne.s32.totalorder %s30, %s33
    %p42 = scmp.eq.s32.totalorder %s13, 1
    %p43 = por %p41, %p42
    %p44 = scmp.ne.s32.totalorder %s33, %s34
    %p45 = scmp.eq.s32.totalorder %s13, 0
    %p46 = por %p44, %p45
    %p47 = scmp.ne.s32.totalorder %s33, %s34
    %p48 = scmp.eq.s32.totalorder %s14, 1
    %p49 = por %p47, %p48
    %p51 = scmp.ne.s32.totalorder %s34, %s50
    %p52 = scmp.eq.s32.totalorder %s14, 0
    %p53 = por %p51, %p52
    %s54 = ssub.s32 %s16, %s23
    %p55 = scmp.eq.s32.totalorder %s54, 0
    %s57 = sadd.s32 %s56, 1
    %s58 = scalar_select %p55, %s56, %s57
    %p61 = pneg %p55
    %p62 = scmp.eq.s32.totalorder %s8, 1
    %p63 = por %p61, %p62
    %p64 = scmp.ne.s32.totalorder %s56, %s59
    %p65 = scmp.eq.s32.totalorder %s8, 0
    %p66 = por %p64, %p65
    %p67 = scmp.ne.s32.totalorder %s56, %s59
    %p68 = scmp.eq.s32.totalorder %s13, 1
    %p69 = por %p67, %p68
    %p70 = scmp.ne.s32.totalorder %s59, %s60
    %p71 = scmp.eq.s32.totalorder %s13, 0
    %p72 = por %p70, %p71
    %p73 = scmp.ne.s32.totalorder %s59, %s60
    %p74 = scmp.eq.s32.totalorder %s14, 1
    %p75 = por %p73, %p74
    %p77 = scmp.ne.s32.totalorder %s60, %s76
    %p78 = scmp.eq.s32.totalorder %s14, 0
    %p79 = por %p77, %p78
    %s80 = ssub.s32 %s15, %s27
    %s81 = ssub.s32 %s16, %s23
    %s82 = sor.u32 %s80, %s81
    %p83 = scmp.eq.s32.totalorder %s82, 0
    %s85 = sadd.s32 %s84, 1
    %s86 = scalar_select %p83, %s84, %s85
    %p89 = pneg %p83
    %p90 = scmp.eq.s32.totalorder %s8, 1
    %p91 = por %p89, %p90
    %p92 = scmp.ne.s32.totalorder %s84, %s87
    %p93 = scmp.eq.s32.totalorder %s8, 0
    %p94 = por %p92, %p93
    %p95 = scmp.ne.s32.totalorder %s84, %s87
    %p96 = scmp.eq.s32.totalorder %s13, 1
    %p97 = por %p95, %p96
    %p98 = scmp.ne.s32.totalorder %s87, %s88
    %p99 = scmp.eq.s32.totalorder %s13, 0
    %p100 = por %p98, %p99
    %p101 = scmp.ne.s32.totalorder %s87, %s88
    %p102 = scmp.eq.s32.totalorder %s14, 1
    %p103 = por %p101, %p102
    %p105 = scmp.ne.s32.totalorder %s88, %s104
    %p106 = scmp.eq.s32.totalorder %s14, 0
    %p107 = por %p105, %p106
    %p108 = scmp.le.s32.totalorder 1, %s8
    %p109 = scmp.lt.s32.totalorder %s8, 3
    %p110 = pnand %p108, %p109
    %p111 = pneg %p110
    // Predicated region
    $region9: #{basic_conv2d.1} parent=5 // pred_check
      _
    $region10: #{basic_conv2d.1} parent=5 // pred_check_branch
      %113 = sbr.rel (%p110) target = $region12
    $region11: #{basic_conv2d.1} parent=5 // pred_region
      %s114 = ssub.s32 %s8, 1
      // Predicated region
      $region13: #{basic_conv2d.1} parent=11 // pred_check
        %p115 = pneg %p72
      $region14: #{basic_conv2d.1} parent=11 // pred_check_branch
        %117 = sbr.rel (%p115) target = $region16
      $region15: #{basic_conv2d.1} parent=11 // pred_region
        %p118 = scmp.lt.s32.totalorder %s18, 0
        %s119 = scalar_select %p118, %s18, 0
        %s120 = smul.addr %s119, 8
        %s121 = scalar_lea.vmem %s1, %s120
      $region16: #{basic_conv2d.1} parent=11 // pred_fallthru
        _
    $region12: #{basic_conv2d.1} parent=5 // pred_fallthru
      _
    %p122 = scmp.lt.s32.totalorder %s8, 2
    // Predicated region
    $region17: #{basic_conv2d.1} parent=5 // pred_check
      %p123 = pneg %p122
    $region18: #{basic_conv2d.1} parent=5 // pred_check_branch
      %125 = sbr.rel (%p123) target = $region20
    $region19: #{basic_conv2d.1} parent=5 // pred_region
      // Predicated region
      $region21: #{basic_conv2d.1} parent=19 // pred_check
        %p126 = pneg %p40
      $region22: #{basic_conv2d.1} parent=19 // pred_check_branch
        %128 = sbr.rel (%p126) target = $region24
      $region23: #{basic_conv2d.1} parent=19 // pred_region
        %p129 = scmp.lt.s32.totalorder %s15, 1
        %s130 = scalar_select %p129, %s15, 1
        %s131 = smul.addr %s130, 3
        %s132 = smul.addr %s131, 8
        %s133 = scalar_lea.vmem %s0, %s132
      $region24: #{basic_conv2d.1} parent=19 // pred_fallthru
        _
    $region20: #{basic_conv2d.1} parent=5 // pred_fallthru
      _
    %p134 = scmp.le.s32.totalorder 1, %s8
    %p135 = scmp.lt.s32.totalorder %s8, 3
    %p136 = pnand %p134, %p135
    %p137 = pneg %p136
    // Predicated region
    $region25: #{basic_conv2d.1} parent=5 // pred_check
      _
    $region26: #{basic_conv2d.1} parent=5 // pred_check_branch
      %139 = sbr.rel (%p136) target = $region28
    $region27: #{basic_conv2d.1} parent=5 // pred_region
      %s140 = ssub.s32 %s8, 1
      %p141 = scmp.lt.s32.totalorder %s17, 1
      %s142 = scalar_select %p141, %s17, 1
      %s143 = smul.addr %s142, 3
      %s144 = smul.addr %s143, 8
      %s145 = scalar_lea.vmem %s0, %s144
      %p146 = pneg %p46
      %p147 = pneg %p43
      %p148 = scmp.lt.s32.totalorder %s18, 0
      %s149 = scalar_select %p148, %s18, 0
      %s150 = smul.addr %s149, 8
      %s151 = scalar_lea.vmem %s1, %s150
      %p152 = pneg %p72
      %p153 = pneg %p69
      %p154 = pneg %p100
      %p155 = pneg %p97
      %p156 = scmp.lt.s32.totalorder %s17, 1
      %s157 = scalar_select %p156, %s17, 1
      %p158 = scmp.lt.s32.totalorder %s18, 0
      %s159 = scalar_select %p158, %s18, 0
      %s160 = smul.addr %s159, 3
      %s161 = smul.addr %s157, 3
      %s162 = sadd.s32 %s160, %s161
      %s163 = smul.addr %s162, 8
      %s164 = scalar_lea.vmem %s2, %s163
      %p165 = scmp.lt.s32.totalorder %s17, 1
      %s166 = scalar_select %p165, %s17, 1
      %s167 = smul.addr %s166, 3
      %s168 = smul.addr %s167, 8
      %s169 = scalar_lea.vmem %s0, %s168
      %p170 = scmp.lt.s32.totalorder %s18, 0
      %s171 = scalar_select %p170, %s18, 0
      %s172 = smul.addr %s171, 8
      %s173 = scalar_lea.vmem %s1, %s172
      %p174 = scmp.lt.s32.totalorder %s17, 1
      %s175 = scalar_select %p174, %s17, 1
      %p176 = scmp.lt.s32.totalorder %s18, 0
      %s177 = scalar_select %p176, %s18, 0
      %s178 = smul.addr %s177, 3
      %s179 = smul.addr %s175, 3
      %s180 = sadd.s32 %s178, %s179
      %s181 = smul.addr %s180, 8
      %s182 = scalar_lea.vmem %s2, %s181
      %v183 = vld [vmem:[%s169] sm:$0xff]
      %v184 = vld [vmem:[%s169 + $0x8] sm:$0xff]
      %v185 = vld [vmem:[%s169 + $0x10] sm:$0xff]
      %186 = vst [vmem:[#allocation2] sm:$0xff] %v183
      %187 = vst [vmem:[#allocation2 + $0x8] sm:$0xff] %v184
      %vm188 = vcmask 261120
      %189 = vst.msk [vmem:[#allocation2 + $0x10] sm:$0xff] %vm188, %v185
      %v190 = vld [vmem:[%s169] sm:$0xff]
      %v191 = vld [vmem:[%s169 + $0x8] sm:$0xff]
      %v192 = vld [vmem:[%s169 + $0x10] sm:$0xff]
      %196 = vrot.lane.b32.xlu0 %v190, 127
      %v197 = vpop.permute.xlu0 %196
      %198 = vrot.lane.b32.xlu0 %v191, 127
      %v199 = vpop.permute.xlu0 %198
      %200 = vrot.lane.b32.xlu0 %v192, 127
      %v201 = vpop.permute.xlu0 %200
      %vm202 = vcmask 1039360
      %v203 = vsel %vm202, %v197, %v199
      %v204 = vsel %vm202, %v199, %v201
      %208 = vst [vmem:[#allocation2 + $0x18] sm:$0xff] %v203
      %209 = vst [vmem:[#allocation2 + $0x20] sm:$0xff] %v204
      %210 = vst.msk [vmem:[#allocation2 + $0x28] sm:$0xff] %vm188, %v201
      %v211 = vld [vmem:[%s169] sm:$0xff]
      %v212 = vld [vmem:[%s169 + $0x8] sm:$0xff]
      %v213 = vld [vmem:[%s169 + $0x10] sm:$0xff]
      %217 = vrot.lane.b32.xlu0 %v211, 126
      %v218 = vpop.permute.xlu0 %217
      %219 = vrot.lane.b32.xlu0 %v212, 126
      %v220 = vpop.permute.xlu0 %219
      %221 = vrot.lane.b32.xlu0 %v213, 126
      %v222 = vpop.permute.xlu0 %221
      %vm223 = vcmask 1031168
      %v224 = vsel %vm223, %v218, %v220
      %v225 = vsel %vm223, %v220, %v222
      %229 = vst [vmem:[#allocation2 + $0x30] sm:$0xff] %v224
      %230 = vst [vmem:[#allocation2 + $0x38] sm:$0xff] %v225
      %231 = vst.msk [vmem:[#allocation2 + $0x40] sm:$0xff] %vm188, %v222
      %v232 = vld [vmem:[%s169] sm:$0xff]
      %v233 = vld [vmem:[%s169 + $0x8] sm:$0xff]
      %v234 = vld [vmem:[%s169 + $0x10] sm:$0xff]
      %238 = vrot.lane.b32.xlu0 %v232, 110
      %v239 = vpop.permute.xlu0 %238
      %240 = vrot.lane.b32.xlu0 %v233, 110
      %v241 = vpop.permute.xlu0 %240
      %242 = vrot.lane.b32.xlu0 %v234, 110
      %v243 = vpop.permute.xlu0 %242
      %vm244 = vcmask 900096
      %v245 = vsel %vm244, %v239, %v241
      %v246 = vsel %vm244, %v241, %v243
      %250 = vst [vmem:[#allocation2 + $0x48] sm:$0xff] %v245
      %251 = vst [vmem:[#allocation2 + $0x50] sm:$0xff] %v246
      %252 = vst.msk [vmem:[#allocation2 + $0x58] sm:$0xff] %vm188, %v243
      %v253 = vld [vmem:[%s169] sm:$0xff]
      %v254 = vld [vmem:[%s169 + $0x8] sm:$0xff]
      %v255 = vld [vmem:[%s169 + $0x10] sm:$0xff]
      %259 = vrot.lane.b32.xlu0 %v253, 109
      %v260 = vpop.permute.xlu0 %259
      %261 = vrot.lane.b32.xlu0 %v254, 109
      %v262 = vpop.permute.xlu0 %261
      %263 = vrot.lane.b32.xlu0 %v255, 109
      %v264 = vpop.permute.xlu0 %263
      %vm265 = vcmask 891904
      %v266 = vsel %vm265, %v260, %v262
      %v267 = vsel %vm265, %v262, %v264
      %271 = vst [vmem:[#allocation2 + $0x60] sm:$0xff] %v266
      %272 = vst [vmem:[#allocation2 + $0x68] sm:$0xff] %v267
      %273 = vst.msk [vmem:[#allocation2 + $0x70] sm:$0xff] %vm188, %v264
      %v274 = vld [vmem:[%s169] sm:$0xff]
      %v275 = vld [vmem:[%s169 + $0x8] sm:$0xff]
      %v276 = vld [vmem:[%s169 + $0x10] sm:$0xff]
      %280 = vrot.lane.b32.xlu0 %v274, 108
      %v281 = vpop.permute.xlu0 %280
      %282 = vrot.lane.b32.xlu0 %v275, 108
      %v283 = vpop.permute.xlu0 %282
      %284 = vrot.lane.b32.xlu0 %v276, 108
      %v285 = vpop.permute.xlu0 %284
      %vm286 = vcmask 883712
      %v287 = vsel %vm286, %v281, %v283
      %v288 = vsel %vm286, %v283, %v285
      %292 = vst [vmem:[#allocation2 + $0x78] sm:$0xff] %v287
      %293 = vst [vmem:[#allocation2 + $0x80] sm:$0xff] %v288
      %294 = vst.msk [vmem:[#allocation2 + $0x88] sm:$0xff] %vm188, %v285
      %v295 = vld [vmem:[%s169] sm:$0xff]
      %v296 = vld [vmem:[%s169 + $0x8] sm:$0xff]
      %v297 = vld [vmem:[%s169 + $0x10] sm:$0xff]
      %301 = vrot.lane.b32.xlu0 %v295, 92
      %v302 = vpop.permute.xlu0 %301
      %303 = vrot.lane.b32.xlu0 %v296, 92
      %v304 = vpop.permute.xlu0 %303
      %305 = vrot.lane.b32.xlu0 %v297, 92
      %v306 = vpop.permute.xlu0 %305
      %vm307 = vcmask 752640
      %v308 = vsel %vm307, %v302, %v304
      %v309 = vsel %vm307, %v304, %v306
      %313 = vst [vmem:[#allocation2 + $0x90] sm:$0xff] %v308
      %314 = vst [vmem:[#allocation2 + $0x98] sm:$0xff] %v309
      %315 = vst.msk [vmem:[#allocation2 + $0xa0] sm:$0xff] %vm188, %v306
      %v316 = vld [vmem:[%s169] sm:$0xff]
      %v317 = vld [vmem:[%s169 + $0x8] sm:$0xff]
      %v318 = vld [vmem:[%s169 + $0x10] sm:$0xff]
      %322 = vrot.lane.b32.xlu0 %v316, 91
      %v323 = vpop.permute.xlu0 %322
      %324 = vrot.lane.b32.xlu0 %v317, 91
      %v325 = vpop.permute.xlu0 %324
      %326 = vrot.lane.b32.xlu0 %v318, 91
      %v327 = vpop.permute.xlu0 %326
      %vm328 = vcmask 744448
      %v329 = vsel %vm328, %v323, %v325
      %v330 = vsel %vm328, %v325, %v327
      %334 = vst [vmem:[#allocation2 + $0xa8] sm:$0xff] %v329
      %335 = vst [vmem:[#allocation2 + $0xb0] sm:$0xff] %v330
      %336 = vst.msk [vmem:[#allocation2 + $0xb8] sm:$0xff] %vm188, %v327
      %v337 = vld [vmem:[%s169] sm:$0xff]
      %v338 = vld [vmem:[%s169 + $0x8] sm:$0xff]
      %v339 = vld [vmem:[%s169 + $0x10] sm:$0xff]
      %343 = vrot.lane.b32.xlu0 %v337, 90
      %v344 = vpop.permute.xlu0 %343
      %345 = vrot.lane.b32.xlu0 %v338, 90
      %v346 = vpop.permute.xlu0 %345
      %347 = vrot.lane.b32.xlu0 %v339, 90
      %v348 = vpop.permute.xlu0 %347
      %vm349 = vcmask 736256
      %v350 = vsel %vm349, %v344, %v346
      %v351 = vsel %vm349, %v346, %v348
      %355 = vst [vmem:[#allocation2 + $0xc0] sm:$0xff] %v350
      %356 = vst [vmem:[#allocation2 + $0xc8] sm:$0xff] %v351
      %357 = vst.msk [vmem:[#allocation2 + $0xd0] sm:$0xff] %vm188, %v348
      %v358 = vld [vmem:[%s173] sm:$0xff]
      %v359 = vld [vmem:[#allocation2] sm:$0xff]
      %v360 = vld [vmem:[#allocation2 + $0x8] sm:$0xff]
      %v361 = vld [vmem:[#allocation2 + $0x10] sm:$0xff]
      %v362 = vld [vmem:[#allocation2 + $0x18] sm:$0xff]
      %v363 = vld [vmem:[#allocation2 + $0x20] sm:$0xff]
      %v364 = vld [vmem:[#allocation2 + $0x28] sm:$0xff]
      %v365 = vld [vmem:[#allocation2 + $0x30] sm:$0xff]
      %v366 = vld [vmem:[#allocation2 + $0x38] sm:$0xff]
      %v367 = vld [vmem:[#allocation2 + $0x40] sm:$0xff]
      %v368 = vld [vmem:[#allocation2 + $0x48] sm:$0xff]
      %v369 = vld [vmem:[#allocation2 + $0x50] sm:$0xff]
      %v370 = vld [vmem:[#allocation2 + $0x58] sm:$0xff]
      %v371 = vld [vmem:[#allocation2 + $0x60] sm:$0xff]
      %v372 = vld [vmem:[#allocation2 + $0x68] sm:$0xff]
      %v373 = vld [vmem:[#allocation2 + $0x70] sm:$0xff]
      %v374 = vld [vmem:[#allocation2 + $0x78] sm:$0xff]
      %v375 = vld [vmem:[#allocation2 + $0x80] sm:$0xff]
      %v376 = vld [vmem:[#allocation2 + $0x88] sm:$0xff]
      %v377 = vld [vmem:[#allocation2 + $0x90] sm:$0xff]
      %v378 = vld [vmem:[#allocation2 + $0x98] sm:$0xff]
      %v379 = vld [vmem:[#allocation2 + $0xa0] sm:$0xff]
      %v380 = vld [vmem:[#allocation2 + $0xa8] sm:$0xff]
      %v381 = vld [vmem:[#allocation2 + $0xb0] sm:$0xff]
      %v382 = vld [vmem:[#allocation2 + $0xb8] sm:$0xff]
      %v383 = vld [vmem:[#allocation2 + $0xc0] sm:$0xff]
      %v384 = vld [vmem:[#allocation2 + $0xc8] sm:$0xff]
      %v385 = vld [vmem:[#allocation2 + $0xd0] sm:$0xff]
      %vm386 = vcmask 588800
      %v388 = vsel %vm386, %v358, 0
      %390 = vmatprep.subr.mxu0 %v360
      %391 = vmatpush1.msra.mxu0 %v359
      %392 = vmatprep.subr.mxu0 %v363
      %393 = vmatpush1.msra.mxu0 %v362
      %394 = vmatprep.subr.mxu0 %v366
      %395 = vmatpush1.msra.mxu0 %v365
      %396 = vmatprep.subr.mxu0 %v369
      %397 = vmatpush1.msra.mxu0 %v368
      %398 = vmatprep.subr.mxu0 %v372
      %399 = vmatpush1.msra.mxu0 %v371
      %400 = vmatprep.subr.mxu0 %v375
      %401 = vmatpush1.msra.mxu0 %v374
      %402 = vmatprep.subr.mxu0 %v378
      %403 = vmatpush1.msra.mxu0 %v377
      %404 = vmatprep.subr.mxu0 %v381
      %405 = vmatpush1.msra.mxu0 %v380
      %406 = vmatprep.subr.mxu0 %v384
      %407 = vmatpush1.msra.mxu0 %v383
      %408 = vmatprep.subr.mxu0 0.0
      %409 = vmatpush1.msra.mxu0 0.0
      %410 = vmatprep.subr.mxu0 0.0
      %411 = vmatpush1.msra.mxu0 0.0
      %412 = vmatprep.subr.mxu0 0.0
      %413 = vmatpush1.msra.mxu0 0.0
      %414 = vmatprep.subr.mxu0 0.0
      %415 = vmatpush1.msra.mxu0 0.0
      %416 = vmatprep.subr.mxu0 0.0
      %417 = vmatpush1.msra.mxu0 0.0
      %418 = vmatprep.subr.mxu0 0.0
      %419 = vmatpush1.msra.mxu0 0.0
      %420 = vmatprep.subr.mxu0 0.0
      %421 = vmatpush1.msra.mxu0 0.0
      %422 = vmatprep.subr.mxu0 0.0
      %423 = vmatpush1.msra.mxu0 0.0
      %424 = vmatprep.subr.mxu0 0.0
      %425 = vmatpush1.msra.mxu0 0.0
      %426 = vmatprep.subr.mxu0 0.0
      %427 = vmatpush1.msra.mxu0 0.0
      %428 = vmatprep.subr.mxu0 0.0
      %429 = vmatpush1.msra.mxu0 0.0
      %430 = vmatprep.subr.mxu0 0.0
      %431 = vmatpush1.msra.mxu0 0.0
      %432 = vmatprep.subr.mxu0 0.0
      %433 = vmatpush1.msra.mxu0 0.0
      %434 = vmatprep.subr.mxu0 0.0
      %435 = vmatpush1.msra.mxu0 0.0
      %436 = vmatprep.subr.mxu0 0.0
      %437 = vmatpush1.msra.mxu0 0.0
      %438 = vmatprep.subr.mxu0 0.0
      %439 = vmatpush1.msra.mxu0 0.0
      %440 = vmatprep.subr.mxu0 0.0
      %441 = vmatpush1.msra.mxu0 0.0
      %442 = vmatprep.subr.mxu0 0.0
      %443 = vmatpush1.msra.mxu0 0.0
      %444 = vmatprep.subr.mxu0 0.0
      %445 = vmatpush1.msra.mxu0 0.0
      %446 = vmatprep.subr.mxu0 0.0
      %447 = vmatpush1.msra.mxu0 0.0
      %448 = vmatprep.subr.mxu0 0.0
      %449 = vmatpush1.msra.mxu0 0.0
      %450 = vmatprep.subr.mxu0 0.0
      %451 = vmatpush1.msra.mxu0 0.0
      %452 = vmatprep.subr.mxu0 0.0
      %453 = vmatpush1.msra.mxu0 0.0
      %454 = vmatprep.mubr.f32.mxu0 0.0
      %455 = vmatmul.mubr.f32.gmra.mrb[0].mxu0 %v388
      %v456 = vpop.f32.mrb[0].mxu0
      %v457 = vadd.f32 0.0, %v456
      %v458 = vpop.f32.mrb[0].mxu0
      %v459 = vadd.f32 0.0, %v458
      %460 = vdwg.mxu0
      %461 = vmatprep.subr.mxu0 0.0
      %462 = vmatpush1.msra.mxu0 %v361
      %463 = vmatprep.subr.mxu0 0.0
      %464 = vmatpush1.msra.mxu0 %v364
      %465 = vmatprep.subr.mxu0 0.0
      %466 = vmatpush1.msra.mxu0 %v367
      %467 = vmatprep.subr.mxu0 0.0
      %468 = vmatpush1.msra.mxu0 %v370
      %469 = vmatprep.subr.mxu0 0.0
      %470 = vmatpush1.msra.mxu0 %v373
      %471 = vmatprep.subr.mxu0 0.0
      %472 = vmatpush1.msra.mxu0 %v376
      %473 = vmatprep.subr.mxu0 0.0
      %474 = vmatpush1.msra.mxu0 %v379
      %475 = vmatprep.subr.mxu0 0.0
      %476 = vmatpush1.msra.mxu0 %v382
      %477 = vmatprep.subr.mxu0 0.0
      %478 = vmatpush1.msra.mxu0 %v385
      %479 = vmatprep.subr.mxu0 0.0
      %480 = vmatpush1.msra.mxu0 0.0
      %481 = vmatprep.subr.mxu0 0.0
      %482 = vmatpush1.msra.mxu0 0.0
      %483 = vmatprep.subr.mxu0 0.0
      %484 = vmatpush1.msra.mxu0 0.0
      %485 = vmatprep.subr.mxu0 0.0
      %486 = vmatpush1.msra.mxu0 0.0
      %487 = vmatprep.subr.mxu0 0.0
      %488 = vmatpush1.msra.mxu0 0.0
      %489 = vmatprep.subr.mxu0 0.0
      %490 = vmatpush1.msra.mxu0 0.0
      %491 = vmatprep.subr.mxu0 0.0
      %492 = vmatpush1.msra.mxu0 0.0
      %493 = vmatprep.subr.mxu0 0.0
      %494 = vmatpush1.msra.mxu0 0.0
      %495 = vmatprep.subr.mxu0 0.0
      %496 = vmatpush1.msra.mxu0 0.0
      %497 = vmatprep.subr.mxu0 0.0
      %498 = vmatpush1.msra.mxu0 0.0
      %499 = vmatprep.subr.mxu0 0.0
      %500 = vmatpush1.msra.mxu0 0.0
      %501 = vmatprep.subr.mxu0 0.0
      %502 = vmatpush1.msra.mxu0 0.0
      %503 = vmatprep.subr.mxu0 0.0
      %504 = vmatpush1.msra.mxu0 0.0
      %505 = vmatprep.subr.mxu0 0.0
      %506 = vmatpush1.msra.mxu0 0.0
      %507 = vmatprep.subr.mxu0 0.0
      %508 = vmatpush1.msra.mxu0 0.0
      %509 = vmatprep.subr.mxu0 0.0
      %510 = vmatpush1.msra.mxu0 0.0
      %511 = vmatprep.subr.mxu0 0.0
      %512 = vmatpush1.msra.mxu0 0.0
      %513 = vmatprep.subr.mxu0 0.0
      %514 = vmatpush1.msra.mxu0 0.0
      %515 = vmatprep.subr.mxu0 0.0
      %516 = vmatpush1.msra.mxu0 0.0
      %517 = vmatprep.subr.mxu0 0.0
      %518 = vmatpush1.msra.mxu0 0.0
      %519 = vmatprep.subr.mxu0 0.0
      %520 = vmatpush1.msra.mxu0 0.0
      %521 = vmatprep.subr.mxu0 0.0
      %522 = vmatpush1.msra.mxu0 0.0
      %523 = vmatprep.subr.mxu0 0.0
      %524 = vmatpush1.msra.mxu0 0.0
      %525 = vmatprep.mubr.f32.mxu0 0.0
      %526 = vmatmul.mubr.f32.gmra.mrb[0].mxu0 %v388
      %v527 = vpop.f32.mrb[0].mxu0
      %v528 = vadd.f32 0.0, %v527
      %v529 = vpop.f32.mrb[0].mxu0
      %530 = vdwg.mxu0
      %531 = vst [vmem:[%s182] sm:$0xff] %v457
      %532 = vst [vmem:[%s182 + $0x8] sm:$0xff] %v459
      %533 = vst.msk [vmem:[%s182 + $0x10] sm:$0xff] %vm188, %v528
      %p534 = scmp.lt.s32.totalorder %s17, 1
      %s535 = scalar_select %p534, %s17, 1
      %p536 = scmp.lt.s32.totalorder %s18, 0
      %s537 = scalar_select %p536, %s18, 0
      %s538 = smul.addr %s537, 3
      %s539 = smul.addr %s535, 3
      %s540 = sadd.s32 %s538, %s539
      %s541 = smul.addr %s540, 8
      %s542 = scalar_lea.vmem %s2, %s541
      // Predicated region
      $region29: #{basic_conv2d.1} parent=27 // pred_check
        %p543 = pneg %p97
      $region30: #{basic_conv2d.1} parent=27 // pred_check_branch
        %545 = sbr.rel (%p543) target = $region32
      $region31: #{basic_conv2d.1} parent=27 // pred_region
        _
      $region32: #{basic_conv2d.1} parent=27 // pred_fallthru
        _
    $region28: #{basic_conv2d.1} parent=5 // pred_fallthru
      _
    %p546 = scmp.le.s32.totalorder 2, %s8
    // Predicated region
    $region33: #{basic_conv2d.1} parent=5 // pred_check
      %p547 = pneg %p546
    $region34: #{basic_conv2d.1} parent=5 // pred_check_branch
      %549 = sbr.rel (%p547) target = $region36
    $region35: #{basic_conv2d.1} parent=5 // pred_region
      %s550 = ssub.s32 %s8, 2
      // Predicated region
      $region37: #{basic_conv2d.1} parent=35 // pred_check
        %p551 = pneg %p103
      $region38: #{basic_conv2d.1} parent=35 // pred_check_branch
        %553 = sbr.rel (%p551) target = $region40
      $region39: #{basic_conv2d.1} parent=35 // pred_region
        %p554 = scmp.lt.s32.totalorder %s19, 1
        %s555 = scalar_select %p554, %s19, 1
        %p556 = scmp.lt.s32.totalorder %s20, 0
        %s557 = scalar_select %p556, %s20, 0
        %s558 = smul.addr %s557, 3
        %s559 = smul.addr %s555, 3
        %s560 = sadd.s32 %s558, %s559
        %s561 = smul.addr %s560, 8
        %s562 = scalar_lea.vmem %s2, %s561
      $region40: #{basic_conv2d.1} parent=35 // pred_fallthru
        _
    $region36: #{basic_conv2d.1} parent=5 // pred_fallthru
      _
  $region6: #{basic_conv2d.1} parent=0 // loop_footer
    %s12 = sadd.s32 1, %s8
  $region7: #{basic_conv2d.1} parent=0 // loop_footer_branch
    %7 = sbr.rel target = $region3
  $region8: #{basic_conv2d.1} parent=0 // loop_exit
    _

</llo_original>
